<compile_context>
chip_gen: v6e
topology: v6e:2x2x1
jax: 0.10.0
libtpu: 0.0.40
codegen_flags: <defaults>
</compile_context>

<pallas_src>
import functools

import jax
import jax.numpy as jnp
from jax import lax
from jax.experimental import pallas as pl
from jax.experimental.pallas import tpu as pltpu

_LANES = 128
# Below this element count the fixed pallas_call launch / pipeline prologue dominates;
# a fused XLA elementwise+reduce is faster and avoids the reshape plumbing.
_MIN_PALLAS_ELEMS = 256 * 1024


def _round_up(x, m):
    return ((x + m - 1) // m) * m


def _sublane_multiple(dtype):
    # f32 -> 8, bf16/f16 -> 16, int8/fp8 -> 32 (sub-32-bit dtypes pack along sublanes).
    return 8 * max(1, 4 // jnp.dtype(dtype).itemsize)


def _max_block_rows():
    # 4096 rows = 2 MiB/stream/step (8 MiB double-buffered with 2 streams): fits the
    # 16 MiB (v5e) / 32 MiB (v6e, v7x) scoped-VMEM defaults with no vmem_limit_bytes
    # override and reaches ~90%+ of HBM roofline on v5e/v6e.
    # On v7x (~3.2 TB/s per TC) go to 8192 rows (16 MiB double-buffered, still under
    # the 32 MiB scoped default / 64 MiB physical VMEM).
    try:
        kind = jax.devices()[0].device_kind.lower()
    except Exception:
        kind = ""
    return 8192 if "v7" in kind else 4096


def _bce_partial_kernel(p_ref, t_ref, o_ref, *, valid_rows, needs_row_mask):
    """Per-block elementwise BCE, folded to an (8, 128) lane-dense partial-sum tile."""
    p = p_ref[...].astype(jnp.float32)
    t = t_ref[...].astype(jnp.float32)

    if needs_row_mask:
        # The last grid block may read past the end of the array (unspecified data).
        # Substitute (p=1, t=1) for those rows BEFORE the logs so their per-element
        # BCE is exactly 0 and no NaN can leak from garbage rows.
        block_rows = p_ref.shape[0]
        row = (pl.program_id(0) * block_rows
               + lax.broadcasted_iota(jnp.int32, p.shape, 0))
        valid = row < valid_rows
        p = jnp.where(valid, p, 1.0)
        t = jnp.where(valid, t, 1.0)

    # binary_cross_entropy per element, with torch's log clamp at -100.
    # TODO(synk): if targets are guaranteed binary, a single log on
    #   p_eff = where(t > 0.5, p, 1 - p) would halve EUP work (matters on v7x), but it
    #   changes semantics for soft targets, so both logs are kept.
    log_p = jnp.maximum(jnp.log(p), -100.0)
    log_1mp = jnp.maximum(jnp.log(1.0 - p), -100.0)
    bce = -(log_1mp + t * (log_p - log_1mp))   # == -(t*log_p + (1-t)*log_1mp), 1 fewer mul

    # Fold (block_rows, 128) -> (8, 128): pure VPU adds across (8, 128) vreg tiles.
    o_ref[0] = jnp.sum(bce.reshape(-1, 8, _LANES), axis=0)


def _bce_sum_flat(p, t):
    """Plain-JAX per-element BCE sum (used for the <128-element tail and the fallback)."""
    p = p.astype(jnp.float32)
    t = t.astype(jnp.float32)
    log_p = jnp.maximum(jnp.log(p), -100.0)
    log_1mp = jnp.maximum(jnp.log(1.0 - p), -100.0)
    return jnp.sum(-(t * log_p + (1.0 - t) * log_1mp))


def _focal_from_bce_mean(bce_mean, alpha, gamma):
    return jnp.float32(alpha) * (1.0 - jnp.exp(-bce_mean)) ** gamma * bce_mean


def focal_loss(inputs, targets, alpha=0.8, gamma=2, smooth=1,
               min_pallas_elems=_MIN_PALLAS_ELEMS):
    """Pallas TPU implementation of FocalLoss.forward. Returns a scalar f32."""
    del smooth  # unused by the reference forward

    p = inputs.reshape(-1)   # keep native dtype; upcast happens in-kernel
    t = targets.reshape(-1)
    n = p.shape[0]

    # Small inputs: a fused XLA elementwise+reduce beats the pallas_call launch cost.
    if n < min_pallas_elems or n < _LANES:
        bce_mean = _bce_sum_flat(p, t) / jnp.float32(n)
        return _focal_from_bce_mean(bce_mean, alpha, gamma)

    # Lane-ragged tail (< 128 elements): added in plain JAX instead of jnp.pad, which
    # would re-materialize both full inputs in HBM just to append <= 127 elements.
    rows = n // _LANES
    tail = n - rows * _LANES
    tail_sum = _bce_sum_flat(p[rows * _LANES:], t[rows * _LANES:]) if tail else 0.0

    p2 = p[: rows * _LANES].reshape(rows, _LANES)
    t2 = t[: rows * _LANES].reshape(rows, _LANES)

    # Block size: as large as comfortably fits double-buffered VMEM, rounded to the
    # dtype sublane multiple, and capped so there are >= 2 grid blocks (keeps the
    # "parallel" axis able to feed both TensorCores on v7x / megacore).
    sub = max(_sublane_multiple(p2.dtype), _sublane_multiple(t2.dtype))
    block_rows = min(_max_block_rows(), _round_up(pl.cdiv(rows, 2), sub))
    block_rows = max(block_rows, sub)
    num_blocks = pl.cdiv(rows, block_rows)
    needs_row_mask = (rows % block_rows) != 0  # static; mask only emitted if required

    kernel = functools.partial(
        _bce_partial_kernel, valid_rows=rows, needs_row_mask=needs_row_mask)

    block = pl.BlockSpec((block_rows, _LANES), lambda i: (i, 0))
    partials = pl.pallas_call(
        kernel,
        out_shape=jax.ShapeDtypeStruct((num_blocks, 8, _LANES), jnp.float32),
        grid_spec=pltpu.PrefetchScalarGridSpec(
            num_scalar_prefetch=0,
            grid=(num_blocks,),
            in_specs=[block, block],
            out_specs=pl.BlockSpec((1, 8, _LANES), lambda i: (i, 0, 0)),
        ),
        compiler_params=pltpu.CompilerParams(
            dimension_semantics=("parallel",)),
    )(p2, t2)

    # Final (tiny) reduction + focal transform: a handful of scalar ops in JAX.
    bce_mean = (jnp.sum(partials) + tail_sum) / jnp.float32(n)
    return _focal_from_bce_mean(bce_mean, alpha, gamma)


def _focal_loss_ref(inputs, targets, alpha=0.8, gamma=2):
    p = inputs.reshape(-1).astype(jnp.float32)
    t = targets.reshape(-1).astype(jnp.float32)
    log_p = jnp.maximum(jnp.log(p), -100.0)
    log_1mp = jnp.maximum(jnp.log(1.0 - p), -100.0)
    bce = jnp.mean(-(t * log_p + (1.0 - t) * log_1mp))
    return alpha * (1.0 - jnp.exp(-bce)) ** gamma * bce


if __name__ == "__main__":
    key = jax.random.PRNGKey(0)
    k1, k2, k3, k4 = jax.random.split(key, 4)

    # Small NCHW shapes consistent with the module: batch=2, channels=4, spatial=16.
    logits = jax.random.normal(k1, (2, 4, 16, 16), dtype=jnp.float32)
    inputs = jax.nn.sigmoid(logits)          # probabilities (F.binary_cross_entropy expects these)
    targets = (jax.random.uniform(k2, (2, 4, 16, 16)) > 0.5).astype(jnp.float32)

    ref = _focal_loss_ref(inputs, targets, alpha=0.8, gamma=2)

    # 1) Default path: small input -> fused-JAX fallback.
    loss_fallback = jax.block_until_ready(focal_loss(inputs, targets, alpha=0.8, gamma=2, smooth=1))
    assert jnp.allclose(loss_fallback, ref, rtol=1e-5, atol=1e-6), (loss_fallback, ref)

    # 2) Force the Pallas kernel path on the same input (lane-aligned case).
    loss_pallas = jax.block_until_ready(
        focal_loss(inputs, targets, alpha=0.8, gamma=2, smooth=1, min_pallas_elems=0))
    assert jnp.allclose(loss_pallas, ref, rtol=1e-5, atol=1e-6), (loss_pallas, ref)

    # 3) Lane-ragged total (1800 elems) -> JAX tail + partial last block mask in-kernel.
    logits2 = jax.random.normal(k3, (2, 4, 15, 15), dtype=jnp.float32)
    inputs2 = jax.nn.sigmoid(logits2)
    targets2 = (jax.random.uniform(k4, (2, 4, 15, 15)) > 0.5).astype(jnp.float32)
    ref2 = _focal_loss_ref(inputs2, targets2, alpha=0.8, gamma=2)
    loss2 = jax.block_until_ready(
        focal_loss(inputs2, targets2, alpha=0.8, gamma=2, smooth=1, min_pallas_elems=0))
    assert jnp.allclose(loss2, ref2, rtol=1e-5, atol=1e-6), (loss2, ref2)

    print("KERNEL_OK")
</pallas_src>

<mosaic_0001>
module attributes {stable_mosaic.version = 11 : i64} {
  func.func @_bce_partial_kernel(%arg0: i32, %arg1: memref<8x128xf32, #tpu.memory_space<vmem>>, %arg2: memref<8x128xf32, #tpu.memory_space<vmem>>, %arg3: memref<1x8x128xf32, #tpu.memory_space<vmem>>) attributes {dimension_semantics = [#tpu.dimension_semantics<parallel>], iteration_bounds = array<i64: 2>, scalar_prefetch = 0 : i64, scratch_operands = 0 : i64, tpu.core_type = #tpu.core_type<tc>, window_params = [{transform_indices = @transform_0, window_bounds = array<i64: 8, 128>}, {transform_indices = @transform_1, window_bounds = array<i64: 8, 128>}, {transform_indices = @transform_2, window_bounds = array<i64: 1, 8, 128>}]} {
    %c0 = arith.constant 0 : index
    %c0_0 = arith.constant 0 : index
    %0 = vector.load %arg1[%c0, %c0_0] : memref<8x128xf32, #tpu.memory_space<vmem>>, vector<8x128xf32>
    %c0_1 = arith.constant 0 : index
    %c0_2 = arith.constant 0 : index
    %1 = vector.load %arg2[%c0_1, %c0_2] : memref<8x128xf32, #tpu.memory_space<vmem>>, vector<8x128xf32>
    %2 = math.log %0 : vector<8x128xf32>
    %cst = arith.constant -1.000000e+02 : f32
    %3 = vector.broadcast %cst : f32 to vector<8x128xf32>
    %4 = arith.maximumf %2, %3 : vector<8x128xf32>
    %cst_3 = arith.constant 1.000000e+00 : f32
    %5 = vector.broadcast %cst_3 : f32 to vector<8x128xf32>
    %6 = arith.subf %5, %0 : vector<8x128xf32>
    %7 = math.log %6 : vector<8x128xf32>
    %cst_4 = arith.constant -1.000000e+02 : f32
    %8 = vector.broadcast %cst_4 : f32 to vector<8x128xf32>
    %9 = arith.maximumf %7, %8 : vector<8x128xf32>
    %10 = arith.subf %4, %9 : vector<8x128xf32>
    %11 = arith.mulf %1, %10 : vector<8x128xf32>
    %12 = arith.addf %9, %11 : vector<8x128xf32>
    %cst_5 = arith.constant 0.000000e+00 : f32
    %13 = vector.broadcast %cst_5 : f32 to vector<8x128xf32>
    %14 = arith.subf %13, %12 : vector<8x128xf32>
    %15 = vector.shape_cast %14 : vector<8x128xf32> to vector<1x8x128xf32>
    %cst_6 = arith.constant dense<0.000000e+00> : vector<8x128xf32>
    %16 = vector.multi_reduction <add>, %15, %cst_6 [0] : vector<1x8x128xf32> to vector<8x128xf32>
    %c0_7 = arith.constant 0 : index
    %c0_8 = arith.constant 0 : index
    %c0_9 = arith.constant 0 : index
    %17 = vector.load %arg3[%c0_7, %c0_8, %c0_9] : memref<1x8x128xf32, #tpu.memory_space<vmem>>, vector<1x8x128xf32>
    %18 = vector.shape_cast %17 : vector<1x8x128xf32> to vector<8x128xf32>
    %19 = vector.shape_cast %16 : vector<8x128xf32> to vector<1x8x128xf32>
    tpu.vector_store %arg3[%c0_7, %c0_8, %c0_9], %19 {strides = array<i32>} : memref<1x8x128xf32, #tpu.memory_space<vmem>>, vector<1x8x128xf32>,
    return
  }
  func.func @transform_0(%arg0: i32) -> (i32, i32) {
    %c0_i32 = arith.constant 0 : i32
    %c0_i32_0 = arith.constant 0 : i32
    return %arg0, %c0_i32 : i32, i32
  }
  func.func @transform_1(%arg0: i32) -> (i32, i32) {
    %c0_i32 = arith.constant 0 : i32
    %c0_i32_0 = arith.constant 0 : i32
    return %arg0, %c0_i32 : i32, i32
  }
  func.func @transform_2(%arg0: i32) -> (i32, i32, i32) {
    %c0_i32 = arith.constant 0 : i32
    %c0_i32_0 = arith.constant 0 : i32
    %c0_i32_1 = arith.constant 0 : i32
    return %arg0, %c0_i32, %c0_i32_0 : i32, i32, i32
  }
}

</mosaic_0001>

<llo_original>
// kernel: tpu_custom_call.1
$region0: #{tpu_custom_call.1}
  #allocation0 [shape = 'u32[]', space=smem, size = 0x4, offset = 0x4, fixed_abs, tag = 'smem constant byte address 0x4 - core index']
  #allocation1 [shape = 'u32[144,128]{1,0:T(1,128)}', space=vmem, size = 0x12000, scoped, tag = 'internal scratch']
  %s0 = inlined_call_operand.hbm [shape: f32[16,128], index: 0, kind: input, shape index: {}]
  %s1 = inlined_call_operand.hbm [shape: f32[16,128], index: 1, kind: input, shape index: {}]
  %s2 = inlined_call_operand.hbm [shape: f32[2,8,128], index: 2, kind: output, shape index: {}]
  %s3 = sld [smem:[#allocation0]]
  $region49: #{tpu_custom_call.1} parent=0
    _
  %s5 = ssub.s32 1, %s3
  %s6 = scalar_select 0, %s5, %s3
  $region1: #{tpu_custom_call.1} parent=0
    #allocation2 [shape = 'u8[8192]{0}', space=vmem, size = 0x2000, scoped, tag = 'input window, operand 0']
    #allocation3 [shape = 's32[2]{0}', space=sflag, size = 0x8, scoped, tag = 'scoped memory for tpu_custom_call.1']
    #allocation4 [shape = 's32[2]{0}', space=sflag, size = 0x8, scoped, tag = 'scoped memory for tpu_custom_call.1']
    #allocation5 [shape = 'u8[8192]{0}', space=vmem, size = 0x2000, scoped, tag = 'input window, operand 1']
    #allocation6 [shape = 's32[2]{0}', space=sflag, size = 0x8, scoped, tag = 'scoped memory for tpu_custom_call.1']
    #allocation7 [shape = 'u8[8192]{0}', space=vmem, size = 0x2000, scoped, tag = 'output window, operand 0']
    %7 = vsyncpa [#allocation3], 0
    %s8 = scalar_lea.sflag [#allocation3], 1
    %9 = vsyncpa %s8, 0
    %10 = vsyncpa [#allocation6], 0
    %s11 = scalar_lea.sflag [#allocation6], 1
    %12 = vsyncpa %s11, 0
    %13 = vsyncpa [#allocation4], 0
    %s14 = scalar_lea.sflag [#allocation4], 1
    %15 = vsyncpa %s14, 0
    loop: start=0, step=1, limit=4
    $region2: #{tpu_custom_call.1} parent=1 // loop_pre_header
      _
    $region3: #{tpu_custom_call.1} parent=1 // loop_header
      %s17 = sphi 0, %s21
      %p18 = scmp.ge.s32.totalorder %s17, 4
      %s27 = sphi 0, %s29
      %s30 = sphi 0, %s27
      %s31 = sphi 0, %s30
      %s47 = sphi 0, %s31
      %s53 = sphi 0, %s55
      %s56 = sphi 0, %s53
      %s57 = sphi 0, %s56
      %s73 = sphi 0, %s57
      %s79 = sphi 0, %s81
      %s82 = sphi 0, %s79
      %s83 = sphi 0, %s82
      %s99 = sphi 0, %s83
    $region4: #{tpu_custom_call.1} parent=1 // loop_header_branch
      %20 = sbr.rel (%p18) target = $region8
    $region5: #{tpu_custom_call.1} parent=1 // loop_body
      %s22 = ssub.s32 %s17, 1
      %s23 = ssub.s32 %s17, 2
      %s24 = sadd.s32 %s17, 1
      %s25 = ssub.s32 %s17, %s24
      %p26 = scmp.eq.s32.totalorder %s25, 0
      %s28 = sadd.s32 %s27, 1
      %s29 = scalar_select %p26, %s27, %s28
      %p32 = pneg %p26
      %p33 = scmp.eq.s32.totalorder %s17, 1
      %p34 = por %p32, %p33
      %p35 = scmp.ne.s32.totalorder %s27, %s30
      %p36 = scmp.eq.s32.totalorder %s17, 0
      %p37 = por %p35, %p36
      %p38 = scmp.ne.s32.totalorder %s27, %s30
      %p39 = scmp.eq.s32.totalorder %s22, 1
      %p40 = por %p38, %p39
      %p41 = scmp.ne.s32.totalorder %s30, %s31
      %p42 = scmp.eq.s32.totalorder %s22, 0
      %p43 = por %p41, %p42
      %p44 = scmp.ne.s32.totalorder %s30, %s31
      %p45 = scmp.eq.s32.totalorder %s23, 1
      %p46 = por %p44, %p45
      %p48 = scmp.ne.s32.totalorder %s31, %s47
      %p49 = scmp.eq.s32.totalorder %s23, 0
      %p50 = por %p48, %p49
      %s51 = ssub.s32 %s17, %s24
      %p52 = scmp.eq.s32.totalorder %s51, 0
      %s54 = sadd.s32 %s53, 1
      %s55 = scalar_select %p52, %s53, %s54
      %p58 = pneg %p52
      %p59 = scmp.eq.s32.totalorder %s17, 1
      %p60 = por %p58, %p59
      %p61 = scmp.ne.s32.totalorder %s53, %s56
      %p62 = scmp.eq.s32.totalorder %s17, 0
      %p63 = por %p61, %p62
      %p64 = scmp.ne.s32.totalorder %s53, %s56
      %p65 = scmp.eq.s32.totalorder %s22, 1
      %p66 = por %p64, %p65
      %p67 = scmp.ne.s32.totalorder %s56, %s57
      %p68 = scmp.eq.s32.totalorder %s22, 0
      %p69 = por %p67, %p68
      %p70 = scmp.ne.s32.totalorder %s56, %s57
      %p71 = scmp.eq.s32.totalorder %s23, 1
      %p72 = por %p70, %p71
      %p74 = scmp.ne.s32.totalorder %s57, %s73
      %p75 = scmp.eq.s32.totalorder %s23, 0
      %p76 = por %p74, %p75
      %s77 = ssub.s32 %s17, %s24
      %p78 = scmp.eq.s32.totalorder %s77, 0
      %s80 = sadd.s32 %s79, 1
      %s81 = scalar_select %p78, %s79, %s80
      %p84 = pneg %p78
      %p85 = scmp.eq.s32.totalorder %s17, 1
      %p86 = por %p84, %p85
      %p87 = scmp.ne.s32.totalorder %s79, %s82
      %p88 = scmp.eq.s32.totalorder %s17, 0
      %p89 = por %p87, %p88
      %p90 = scmp.ne.s32.totalorder %s79, %s82
      %p91 = scmp.eq.s32.totalorder %s22, 1
      %p92 = por %p90, %p91
      %p93 = scmp.ne.s32.totalorder %s82, %s83
      %p94 = scmp.eq.s32.totalorder %s22, 0
      %p95 = por %p93, %p94
      %p96 = scmp.ne.s32.totalorder %s82, %s83
      %p97 = scmp.eq.s32.totalorder %s23, 1
      %p98 = por %p96, %p97
      %p100 = scmp.ne.s32.totalorder %s83, %s99
      %p101 = scmp.eq.s32.totalorder %s23, 0
      %p102 = por %p100, %p101
      %p103 = scmp.le.s32.totalorder 1, %s17
      %p104 = scmp.lt.s32.totalorder %s17, 3
      %p105 = pnand %p103, %p104
      %p106 = pneg %p105
      // Predicated region
      $region9: #{tpu_custom_call.1} parent=5 // pred_check
        _
      $region10: #{tpu_custom_call.1} parent=5 // pred_check_branch
        %108 = sbr.rel (%p105) target = $region12
      $region11: #{tpu_custom_call.1} parent=5 // pred_region
        %s109 = ssub.s32 %s17, 1
      $region12: #{tpu_custom_call.1} parent=5 // pred_fallthru
        _
      %p110 = scmp.lt.s32.totalorder %s17, 2
      // Predicated region
      $region13: #{tpu_custom_call.1} parent=5 // pred_check
        %p111 = pneg %p110
      $region14: #{tpu_custom_call.1} parent=5 // pred_check_branch
        %113 = sbr.rel (%p111) target = $region16
      $region15: #{tpu_custom_call.1} parent=5 // pred_region
        // Predicated region
        $region17: #{tpu_custom_call.1} parent=15 // pred_check
          %p114 = pneg %p37
        $region18: #{tpu_custom_call.1} parent=15 // pred_check_branch
          %116 = sbr.rel (%p114) target = $region20
        $region19: #{tpu_custom_call.1} parent=15 // pred_region
          %s117 = sand.u32 %s27, 1
          %s118 = scalar_lea.sflag [#allocation3], %s117
          %s119 = sand.u32 %s27, 1
          %s120 = smul.addr %s119, 8
          %s121 = scalar_lea.vmem [#allocation2], %s120
          %s123 = ssub.s32 128, 128
          %124 = vsyncadd %s118, %s123
          %s125 = smul.addr %s17, 128
          %s126 = scalar_lea.hbm %s0, %s125
          %s128 = sshll.u32 %s121, 4
          %s129 = int_to_ptr.vmem [resolvable:$true] %s128
          %131 = dma.hbm_to_vmem [thread:$0]  %s126, 128, %s129, %s118
        $region20: #{tpu_custom_call.1} parent=15 // pred_fallthru
          _
        // Predicated region
        $region21: #{tpu_custom_call.1} parent=15 // pred_check
          %p132 = pneg %p63
        $region22: #{tpu_custom_call.1} parent=15 // pred_check_branch
          %134 = sbr.rel (%p132) target = $region24
        $region23: #{tpu_custom_call.1} parent=15 // pred_region
          %s135 = sand.u32 %s53, 1
          %s136 = scalar_lea.sflag [#allocation6], %s135
          %s137 = sand.u32 %s53, 1
          %s138 = smul.addr %s137, 8
          %s139 = scalar_lea.vmem [#allocation5], %s138
          %s141 = ssub.s32 128, 128
          %142 = vsyncadd %s136, %s141
          %s143 = smul.addr %s17, 128
          %s144 = scalar_lea.hbm %s1, %s143
          %s146 = sshll.u32 %s139, 4
          %s147 = int_to_ptr.vmem [resolvable:$true] %s146
          %149 = dma.hbm_to_vmem [thread:$0]  %s144, 128, %s147, %s136
        $region24: #{tpu_custom_call.1} parent=15 // pred_fallthru
          _
      $region16: #{tpu_custom_call.1} parent=5 // pred_fallthru
        _
      %p150 = scmp.le.s32.totalorder 1, %s17
      %p151 = scmp.lt.s32.totalorder %s17, 3
      %p152 = pnand %p150, %p151
      %p153 = pneg %p152
      // Predicated region
      $region25: #{tpu_custom_call.1} parent=5 // pred_check
        _
      $region26: #{tpu_custom_call.1} parent=5 // pred_check_branch
        %155 = sbr.rel (%p152) target = $region28
      $region27: #{tpu_custom_call.1} parent=5 // pred_region
        %s156 = ssub.s32 %s17, 1
        %s157 = sand.u32 %s30, 1
        %s158 = scalar_lea.sflag [#allocation3], %s157
        %s159 = sand.u32 %s30, 1
        %s160 = smul.addr %s159, 8
        %s161 = scalar_lea.vmem [#allocation2], %s160
        // Predicated region
        $region29: #{tpu_custom_call.1} parent=27 // pred_check
          %p162 = pneg %p43
        $region30: #{tpu_custom_call.1} parent=27 // pred_check_branch
          %164 = sbr.rel (%p162) target = $region32
        $region31: #{tpu_custom_call.1} parent=27 // pred_region
          %165 = dma.done %s158, 128
        $region32: #{tpu_custom_call.1} parent=27 // pred_fallthru
          _
        %s166 = sand.u32 %s56, 1
        %s167 = scalar_lea.sflag [#allocation6], %s166
        %s168 = sand.u32 %s56, 1
        %s169 = smul.addr %s168, 8
        %s170 = scalar_lea.vmem [#allocation5], %s169
        // Predicated region
        $region33: #{tpu_custom_call.1} parent=27 // pred_check
          %p171 = pneg %p69
        $region34: #{tpu_custom_call.1} parent=27 // pred_check_branch
          %173 = sbr.rel (%p171) target = $region36
        $region35: #{tpu_custom_call.1} parent=27 // pred_region
          %174 = dma.done %s167, 128
        $region36: #{tpu_custom_call.1} parent=27 // pred_fallthru
          _
        %s175 = sand.u32 %s30, 1
        %s176 = scalar_lea.sflag [#allocation3], %s175
        %s177 = sand.u32 %s30, 1
        %s178 = smul.addr %s177, 8
        %s179 = scalar_lea.vmem [#allocation2], %s178
        %p180 = pneg %p43
        %p181 = pneg %p40
        %s182 = sand.u32 %s56, 1
        %s183 = scalar_lea.sflag [#allocation6], %s182
        %s184 = sand.u32 %s56, 1
        %s185 = smul.addr %s184, 8
        %s186 = scalar_lea.vmem [#allocation5], %s185
        %p187 = pneg %p69
        %p188 = pneg %p66
        %p189 = pneg %p95
        %p190 = pneg %p92
        %s191 = sand.u32 %s82, 1
        %s192 = scalar_lea.sflag [#allocation4], %s191
        %s193 = sand.u32 %s82, 1
        %s194 = smul.addr %s193, 8
        %s195 = scalar_lea.vmem [#allocation7], %s194
        %v196 = vld [vmem:[%s161] sm:$0xff]
        %v197 = vld [vmem:[%s170] sm:$0xff]
        %v198 = vlog2.pop %v196
        %v199 = vmul.f32 %v198, 0.6931472
        %v200 = vmax.f32 %v199, -100.0
        %v201 = vsub.f32 1.0, %v196
        %v202 = vlog2.pop %v201
        %v203 = vmul.f32 %v202, 0.6931472
        %v204 = vmax.f32 %v203, -100.0
        %v205 = vsub.f32 %v200, %v204
        %v206 = vmul.f32 %v197, %v205
        %v207 = vadd.f32 %v204, %v206
        %v208 = vsub.f32 0.0, %v207
        %v209 = vadd.f32 %v208, 0.0
        %210 = vst [vmem:[%s195] sm:$0xff] %v209
        %s211 = sand.u32 %s82, 1
        %s212 = scalar_lea.sflag [#allocation4], %s211
        %s213 = sand.u32 %s82, 1
        %s214 = smul.addr %s213, 8
        %s215 = scalar_lea.vmem [#allocation7], %s214
        // Predicated region
        $region37: #{tpu_custom_call.1} parent=27 // pred_check
          %p216 = pneg %p92
        $region38: #{tpu_custom_call.1} parent=27 // pred_check_branch
          %218 = sbr.rel (%p216) target = $region40
        $region39: #{tpu_custom_call.1} parent=27 // pred_region
          %s220 = ssub.s32 128, 128
          %221 = vsyncadd %s212, %s220
          %s222 = smul.addr %s22, 128
          %s223 = scalar_lea.hbm %s2, %s222
          %s225 = sshll.u32 %s215, 4
          %s226 = int_to_ptr.vmem [resolvable:$true] %s225
          %228 = dma.vmem_to_hbm [thread:$0]  %s226, 128, %s223, %s212
        $region40: #{tpu_custom_call.1} parent=27 // pred_fallthru
          _
      $region28: #{tpu_custom_call.1} parent=5 // pred_fallthru
        _
      %p229 = scmp.le.s32.totalorder 2, %s17
      // Predicated region
      $region41: #{tpu_custom_call.1} parent=5 // pred_check
        %p230 = pneg %p229
      $region42: #{tpu_custom_call.1} parent=5 // pred_check_branch
        %232 = sbr.rel (%p230) target = $region44
      $region43: #{tpu_custom_call.1} parent=5 // pred_region
        %s233 = ssub.s32 %s17, 2
        // Predicated region
        $region45: #{tpu_custom_call.1} parent=43 // pred_check
          %p234 = pneg %p98
        $region46: #{tpu_custom_call.1} parent=43 // pred_check_branch
          %236 = sbr.rel (%p234) target = $region48
        $region47: #{tpu_custom_call.1} parent=43 // pred_region
          %s237 = sand.u32 %s83, 1
          %s238 = scalar_lea.sflag [#allocation4], %s237
          %s239 = sand.u32 %s83, 1
          %s240 = smul.addr %s239, 8
          %s241 = scalar_lea.vmem [#allocation7], %s240
          %242 = dma.done %s238, 128
        $region48: #{tpu_custom_call.1} parent=43 // pred_fallthru
          _
      $region44: #{tpu_custom_call.1} parent=5 // pred_fallthru
        _
    $region6: #{tpu_custom_call.1} parent=1 // loop_footer
      %s21 = sadd.s32 1, %s17
    $region7: #{tpu_custom_call.1} parent=1 // loop_footer_branch
      %16 = sbr.rel target = $region3
    $region8: #{tpu_custom_call.1} parent=1 // loop_exit
      _
    %243 = vsyncpa [#allocation3], 1
    %s244 = scalar_lea.sflag [#allocation3], 1
    %245 = vsyncpa %s244, 1
    %246 = vsyncpa [#allocation6], 1
    %s247 = scalar_lea.sflag [#allocation6], 1
    %248 = vsyncpa %s247, 1
    %249 = vsyncpa [#allocation4], 1
    %s250 = scalar_lea.sflag [#allocation4], 1
    %251 = vsyncpa %s250, 1

</llo_original>
